<compile_context>
chip_gen: v7x
topology: tpu7x:2x2x1
jax: 0.10.0
libtpu: 0.0.40
codegen_flags: <defaults>
</compile_context>

<pallas_src>
import jax
import jax.numpy as jnp
from jax.experimental import pallas as pl
from jax.experimental.pallas import tpu as pltpu


_HIDDEN1, _HIDDEN2 = 100, 25        # logical sizes from the PyTorch module
_H1_PAD, _H2_PAD = 128, 32          # tile-aligned padded sizes

_LANE = 128
_DEFAULT_TILE_B = 16 * 1024                  # requested rows per grid step
_VMEM_DATA_BUDGET = 40 * 1024 * 1024         # bytes for streamed data + temps
_VMEM_WEIGHT_RESERVE = 512 * 1024            # resident weights / biases
_VMEM_LIMIT_BYTES = 48 * 1024 * 1024         # scoped VMEM (<= v7x 64 MiB phys)


def _round_up(x, m):
    return (x + m - 1) // m * m


def _per_row_vmem_bytes(D):
    """Conservative f32 VMEM bytes per batch row (lane/sublane-padded)."""
    d_lanes = _round_up(max(D, 1), _LANE)
    x_bytes = 2 * d_lanes * 4          # streamed x block, double-buffered
    h1_bytes = _H1_PAD * 4             # (tile_b, 128)
    h2_bytes = _LANE * 4               # (tile_b, 32) lane-pads to 128 in VMEM
    h2t_bytes = 2 * _H2_PAD * 4        # transpose + broadcast product
    out_bytes = 2 * 8 * 4              # (1, tile_b) sublane-pads to 8, dbl-buf
    return x_bytes + h1_bytes + h2_bytes + h2t_bytes + out_bytes


def _pick_tile_b(B, D, requested):
    """Largest 128-multiple tile that covers B and fits the VMEM budget."""
    per_row = _per_row_vmem_bytes(D)
    budget = _VMEM_DATA_BUDGET - _VMEM_WEIGHT_RESERVE
    cap_rows = max(_LANE, (budget // per_row) // _LANE * _LANE)
    tile_b = min(int(requested), _round_up(B, _LANE), cap_rows)
    return max(_LANE, tile_b // _LANE * _LANE)


def _mlp_kernel(x_ref, w1_ref, b1_ref, w2_ref, b2_ref, w3_ref, b3_ref, o_ref):
    x = x_ref[...]                                                  # (TB, D) f32

    # Layer 1: Linear(D, 128-padded) + ReLU   (MXU, f32 accumulate)
    h1 = jnp.dot(x, w1_ref[...], preferred_element_type=jnp.float32) + b1_ref[...]
    h1 = jnp.maximum(h1, 0.0)

    # Layer 2: Linear(128, 32-padded) + ReLU
    h2 = jnp.dot(h1, w2_ref[...], preferred_element_type=jnp.float32) + b2_ref[...]
    h2 = jnp.maximum(h2, 0.0)                                       # (TB, H2P)

    # Layer 3 (output width == 1): keep it off the MXU. XLU transpose onto the
    # lane axis, VPU broadcast-multiply by the weight column, sublane reduce
    # -> lane-dense (1, TB) row. (If bundle dumps ever show the XLU binding at
    # very large tiles, fall back to jnp.dot(h2, w3).)
    h2t = h2.T                                                      # (H2P, TB)
    z = jnp.sum(h2t * w3_ref[...], axis=0, keepdims=True) + b3_ref[0]   # (1, TB)

    # Softplus (PyTorch default: beta=1, threshold=20)
    sp = jnp.log1p(jnp.exp(jnp.minimum(z, 20.0)))
    o_ref[...] = jnp.where(z > 20.0, z, sp)


def surrogate_network_forward(x, params, *, tile_b=_DEFAULT_TILE_B):
    """x: (B, D) float32. params: padded, (in, out)-transposed weights."""
    B, D = x.shape
    h1p = params["w1"].shape[1]
    h2p = params["w2"].shape[1]

    # Tile the batch; tile_b is a multiple of 128 sized against the padded
    # VMEM footprint. Pad B to a whole number of tiles (padded rows discarded).
    tile_b = _pick_tile_b(B, D, tile_b)
    b_pad = _round_up(B, tile_b)
    num_tiles = b_pad // tile_b
    if b_pad != B:
        x = jnp.pad(x, ((0, b_pad - B), (0, 0)))

    def resident2d(shape):
        # Whole-array block, same block index every grid step -> stays in VMEM.
        return pl.BlockSpec(shape, lambda i: (0, 0))

    cost = pl.CostEstimate(
        flops=2 * b_pad * (D * h1p + h1p * h2p + h2p),
        transcendentals=2 * b_pad,
        bytes_accessed=4 * (b_pad * (D + 1)
                            + D * h1p + h1p * h2p + h2p + h1p + h2p + 1),
    )

    out = pl.pallas_call(
        _mlp_kernel,
        out_shape=jax.ShapeDtypeStruct((num_tiles, 1, tile_b), jnp.float32),
        grid_spec=pltpu.PrefetchScalarGridSpec(
            num_scalar_prefetch=0,
            grid=(num_tiles,),
            in_specs=[
                pl.BlockSpec((tile_b, D), lambda i: (i, 0)),   # streamed x tile
                resident2d((D, h1p)),                          # w1 (resident)
                resident2d((1, h1p)),                          # b1
                resident2d((h1p, h2p)),                        # w2
                resident2d((1, h2p)),                          # b2
                resident2d((h2p, 1)),                          # w3 (column)
                pl.BlockSpec(memory_space=pltpu.MemorySpace.SMEM),  # b3 scalar
            ],
            # Lane-dense output: each grid step writes one (1, tile_b) row.
            out_specs=pl.BlockSpec((None, 1, tile_b), lambda i: (i, 0, 0)),
        ),
        compiler_params=pltpu.CompilerParams(
            dimension_semantics=("parallel",),       # megacore sharding on v7x
            vmem_limit_bytes=_VMEM_LIMIT_BYTES,
        ),
        cost_estimate=cost,
    )(x, params["w1"], params["b1"], params["w2"], params["b2"],
      params["w3"], params["b3"])

    return out.reshape(b_pad, 1)[:B]


def init_params(key, input_dim):
    """PyTorch nn.Linear-style uniform init. Returns (padded, raw) param dicts;
    padded weights are (in, out)-transposed and zero-padded to tile-aligned
    hidden sizes (100 -> 128, 25 -> 32)."""
    def u(k, shape, fan_in):
        bound = 1.0 / float(fan_in) ** 0.5
        return jax.random.uniform(k, shape, jnp.float32, minval=-bound, maxval=bound)

    k = jax.random.split(key, 6)
    raw = {
        "w1": u(k[0], (input_dim, _HIDDEN1), input_dim),
        "b1": u(k[1], (1, _HIDDEN1), input_dim),
        "w2": u(k[2], (_HIDDEN1, _HIDDEN2), _HIDDEN1),
        "b2": u(k[3], (1, _HIDDEN2), _HIDDEN1),
        "w3": u(k[4], (_HIDDEN2, 1), _HIDDEN2),
        "b3": u(k[5], (1,), _HIDDEN2),
    }

    # Zero padding is mathematically inert (padded b1/b2 are zero so the ReLU
    # lanes stay 0 and the padded w3 rows contribute nothing) but gives
    # (8,128)-friendly layouts.
    padded = {
        "w1": jnp.pad(raw["w1"], ((0, 0), (0, _H1_PAD - _HIDDEN1))),
        "b1": jnp.pad(raw["b1"], ((0, 0), (0, _H1_PAD - _HIDDEN1))),
        "w2": jnp.pad(raw["w2"], ((0, _H1_PAD - _HIDDEN1), (0, _H2_PAD - _HIDDEN2))),
        "b2": jnp.pad(raw["b2"], ((0, 0), (0, _H2_PAD - _HIDDEN2))),
        "w3": jnp.pad(raw["w3"], ((0, _H2_PAD - _HIDDEN2), (0, 0))),
        "b3": raw["b3"],
    }
    return padded, raw


def reference_forward(x, raw):
    """Pure-JAX reference on the UNPADDED (logical) parameters."""
    h1 = jnp.maximum(x @ raw["w1"] + raw["b1"], 0.0)
    h2 = jnp.maximum(h1 @ raw["w2"] + raw["b2"], 0.0)
    z = h2 @ raw["w3"] + raw["b3"]
    return jnp.where(z > 20.0, z, jnp.log1p(jnp.exp(jnp.minimum(z, 20.0))))


if __name__ == "__main__":
    key = jax.random.PRNGKey(0)
    k_x, k_p = jax.random.split(key)

    batch, input_dim = 8, 16
    x = jax.random.normal(k_x, (batch, input_dim), dtype=jnp.float32)
    params, raw_params = init_params(k_p, input_dim)

    out = jax.block_until_ready(surrogate_network_forward(x, params))
    ref = reference_forward(x, raw_params)

    assert out.shape == (batch, 1), out.shape
    assert jnp.allclose(out, ref, atol=1e-5, rtol=1e-5), float(jnp.max(jnp.abs(out - ref)))

    print("KERNEL_OK")
</pallas_src>

<mosaic_0001>
module attributes {stable_mosaic.version = 11 : i64} {
  func.func @_mlp_kernel(%arg0: i32, %arg1: memref<128x16xf32, #tpu.memory_space<vmem>>, %arg2: memref<16x128xf32, #tpu.memory_space<vmem>>, %arg3: memref<1x128xf32, #tpu.memory_space<vmem>>, %arg4: memref<128x32xf32, #tpu.memory_space<vmem>>, %arg5: memref<1x32xf32, #tpu.memory_space<vmem>>, %arg6: memref<32x1xf32, #tpu.memory_space<vmem>>, %arg7: memref<1xf32, #tpu.memory_space<smem>>, %arg8: memref<1x1x128xf32, #tpu.memory_space<vmem>>) attributes {dimension_semantics = [#tpu.dimension_semantics<parallel>], iteration_bounds = array<i64: 1>, scalar_prefetch = 0 : i64, scratch_operands = 0 : i64, tpu.core_type = #tpu.core_type<tc>, window_params = [{transform_indices = @transform_0, window_bounds = array<i64: 128, 16>}, {pipeline_mode = #tpu.pipeline_mode<synchronous>, transform_indices = @transform_1, window_bounds = array<i64: 16, 128>}, {pipeline_mode = #tpu.pipeline_mode<synchronous>, transform_indices = @transform_2, window_bounds = array<i64: 1, 128>}, {pipeline_mode = #tpu.pipeline_mode<synchronous>, transform_indices = @transform_3, window_bounds = array<i64: 128, 32>}, {pipeline_mode = #tpu.pipeline_mode<synchronous>, transform_indices = @transform_4, window_bounds = array<i64: 1, 32>}, {pipeline_mode = #tpu.pipeline_mode<synchronous>, transform_indices = @transform_5, window_bounds = array<i64: 32, 1>}, {transform_indices = @transform_6, window_bounds = array<i64: 1>}, {transform_indices = @transform_7, window_bounds = array<i64: 1, 1, 128>}]} {
    %c0 = arith.constant 0 : index
    %c0_0 = arith.constant 0 : index
    %0 = vector.load %arg1[%c0, %c0_0] : memref<128x16xf32, #tpu.memory_space<vmem>>, vector<128x16xf32>
    %c0_1 = arith.constant 0 : index
    %c0_2 = arith.constant 0 : index
    %1 = vector.load %arg2[%c0_1, %c0_2] : memref<16x128xf32, #tpu.memory_space<vmem>>, vector<16x128xf32>
    %cst = arith.constant dense<0.000000e+00> : vector<128x128xf32>
    %2 = tpu.matmul %0, %1, %cst {dimension_numbers = #tpu.dot_dimension_numbers<[1], [0], [0], [1], [0, 0, 1, 1], [], []>} : vector<128x16xf32>, vector<16x128xf32>, vector<128x128xf32> -> vector<128x128xf32>
    %c0_3 = arith.constant 0 : index
    %c0_4 = arith.constant 0 : index
    %3 = vector.load %arg3[%c0_3, %c0_4] : memref<1x128xf32, #tpu.memory_space<vmem>>, vector<1x128xf32>
    %4 = vector.broadcast %3 : vector<1x128xf32> to vector<128x128xf32>
    %5 = arith.addf %2, %4 : vector<128x128xf32>
    %cst_5 = arith.constant 0.000000e+00 : f32
    %6 = vector.broadcast %cst_5 : f32 to vector<128x128xf32>
    %7 = arith.maximumf %5, %6 : vector<128x128xf32>
    %c0_6 = arith.constant 0 : index
    %c0_7 = arith.constant 0 : index
    %8 = vector.load %arg4[%c0_6, %c0_7] : memref<128x32xf32, #tpu.memory_space<vmem>>, vector<128x32xf32>
    %cst_8 = arith.constant dense<0.000000e+00> : vector<128x32xf32>
    %9 = tpu.matmul %7, %8, %cst_8 {dimension_numbers = #tpu.dot_dimension_numbers<[1], [0], [0], [1], [0, 0, 1, 1], [], []>} : vector<128x128xf32>, vector<128x32xf32>, vector<128x32xf32> -> vector<128x32xf32>
    %c0_9 = arith.constant 0 : index
    %c0_10 = arith.constant 0 : index
    %10 = vector.load %arg5[%c0_9, %c0_10] : memref<1x32xf32, #tpu.memory_space<vmem>>, vector<1x32xf32>
    %11 = vector.broadcast %10 : vector<1x32xf32> to vector<128x32xf32>
    %12 = arith.addf %9, %11 : vector<128x32xf32>
    %cst_11 = arith.constant 0.000000e+00 : f32
    %13 = vector.broadcast %cst_11 : f32 to vector<128x32xf32>
    %14 = arith.maximumf %12, %13 : vector<128x32xf32>
    %15 = tpu.transpose %14, [1, 0] : vector<128x32xf32> -> vector<32x128xf32>
    %c0_12 = arith.constant 0 : index
    %c0_13 = arith.constant 0 : index
    %16 = vector.load %arg6[%c0_12, %c0_13] : memref<32x1xf32, #tpu.memory_space<vmem>>, vector<32x1xf32>
    %17 = vector.broadcast %16 : vector<32x1xf32> to vector<32x128xf32>
    %18 = arith.mulf %15, %17 : vector<32x128xf32>
    %cst_14 = arith.constant dense<0.000000e+00> : vector<128xf32>
    %19 = vector.multi_reduction <add>, %18, %cst_14 [0] : vector<32x128xf32> to vector<128xf32>
    %20 = vector.shape_cast %19 : vector<128xf32> to vector<1x128xf32>
    %c0_15 = arith.constant 0 : index
    %21 = memref.load %arg7[%c0_15] : memref<1xf32, #tpu.memory_space<smem>>
    %22 = vector.broadcast %21 : f32 to vector<1x128xf32>
    %23 = arith.addf %20, %22 : vector<1x128xf32>
    %cst_16 = arith.constant 2.000000e+01 : f32
    %24 = vector.broadcast %cst_16 : f32 to vector<1x128xf32>
    %25 = arith.minimumf %23, %24 : vector<1x128xf32>
    %26 = math.exp %25 : vector<1x128xf32>
    %27 = math.log1p %26 : vector<1x128xf32>
    %cst_17 = arith.constant 2.000000e+01 : f32
    %28 = vector.broadcast %cst_17 : f32 to vector<1x128xf32>
    %29 = arith.cmpf ogt, %23, %28 : vector<1x128xf32>
    %30 = arith.select %29, %23, %27 : vector<1x128xi1>, vector<1x128xf32>
    %c0_18 = arith.constant 0 : index
    %c0_19 = arith.constant 0 : index
    %c0_20 = arith.constant 0 : index
    %31 = vector.load %arg8[%c0_18, %c0_19, %c0_20] : memref<1x1x128xf32, #tpu.memory_space<vmem>>, vector<1x1x128xf32>
    %32 = vector.shape_cast %31 : vector<1x1x128xf32> to vector<1x128xf32>
    %33 = vector.shape_cast %30 : vector<1x128xf32> to vector<1x1x128xf32>
    tpu.vector_store %arg8[%c0_18, %c0_19, %c0_20], %33 {strides = array<i32>} : memref<1x1x128xf32, #tpu.memory_space<vmem>>, vector<1x1x128xf32>,
    return
  }
  func.func @transform_0(%arg0: i32) -> (i32, i32) {
    %c0_i32 = arith.constant 0 : i32
    %c0_i32_0 = arith.constant 0 : i32
    return %arg0, %c0_i32 : i32, i32
  }
  func.func @transform_1(%arg0: i32) -> (i32, i32) {
    %c0_i32 = arith.constant 0 : i32
    %c0_i32_0 = arith.constant 0 : i32
    %c0_i32_1 = arith.constant 0 : i32
    return %c0_i32, %c0_i32_0 : i32, i32
  }
  func.func @transform_2(%arg0: i32) -> (i32, i32) {
    %c0_i32 = arith.constant 0 : i32
    %c0_i32_0 = arith.constant 0 : i32
    %c0_i32_1 = arith.constant 0 : i32
    return %c0_i32, %c0_i32_0 : i32, i32
  }
  func.func @transform_3(%arg0: i32) -> (i32, i32) {
    %c0_i32 = arith.constant 0 : i32
    %c0_i32_0 = arith.constant 0 : i32
    %c0_i32_1 = arith.constant 0 : i32
    return %c0_i32, %c0_i32_0 : i32, i32
  }
  func.func @transform_4(%arg0: i32) -> (i32, i32) {
    %c0_i32 = arith.constant 0 : i32
    %c0_i32_0 = arith.constant 0 : i32
    %c0_i32_1 = arith.constant 0 : i32
    return %c0_i32, %c0_i32_0 : i32, i32
  }
  func.func @transform_5(%arg0: i32) -> (i32, i32) {
    %c0_i32 = arith.constant 0 : i32
    %c0_i32_0 = arith.constant 0 : i32
    %c0_i32_1 = arith.constant 0 : i32
    return %c0_i32, %c0_i32_0 : i32, i32
  }
  func.func @transform_6(%arg0: i32) -> i32 {
    %c0_i32 = arith.constant 0 : i32
    %c0_i32_0 = arith.constant 0 : i32
    return %c0_i32 : i32
  }
  func.func @transform_7(%arg0: i32) -> (i32, i32, i32) {
    %c0_i32 = arith.constant 0 : i32
    %c0_i32_0 = arith.constant 0 : i32
    %c0_i32_1 = arith.constant 0 : i32
    return %arg0, %c0_i32, %c0_i32_0 : i32, i32, i32
  }
}

</mosaic_0001>

<llo_original>
// kernel: tpu_custom_call.1
$region0: #{tpu_custom_call.1}
  #allocation0 [shape = 'u32[]', space=smem, size = 0x4, offset = 0x4, fixed_abs, tag = 'smem constant byte address 0x4 - core index']
  #allocation1 [shape = 'u32[144,128]{1,0:T(1,128)}', space=vmem, size = 0x12000, scoped, tag = 'internal scratch']
  #allocation2 [shape = 'f32[1]{0:T(128)S(6)}', space=smem, size = 0x200, scoped, tag = 'scoped memory for tpu_custom_call.1']
  %s0 = inlined_call_operand.vmem [shape: f32[128,16], index: 0, kind: input, shape index: {}]
  %s1 = inlined_call_operand.vmem [shape: f32[16,128], index: 1, kind: input, shape index: {}]
  %s2 = inlined_call_operand.vmem [shape: f32[1,128], index: 2, kind: input, shape index: {}]
  %s3 = inlined_call_operand.vmem [shape: f32[128,32], index: 3, kind: input, shape index: {}]
  %s4 = inlined_call_operand.vmem [shape: f32[1,32], index: 4, kind: input, shape index: {}]
  %s5 = inlined_call_operand.vmem [shape: f32[32,1], index: 5, kind: input, shape index: {}]
  %s6 = inlined_call_operand.<no memory space> [shape: f32[1], index: 6, kind: input, shape index: {}]
  %s7 = inlined_call_operand.hbm [shape: f32[1,1,128], index: 7, kind: output, shape index: {}]
  %s8 = sld [smem:[#allocation0]]
  $region38: #{tpu_custom_call.1} parent=0
    _
  %s10 = ssub.s32 1, %s8
  %s11 = scalar_select 0, %s10, %s8
  %12 = sst [smem:[#allocation2]] %s6
  $region1: #{tpu_custom_call.1} parent=0
    #allocation3 [shape = 'u8[512]{0}', space=vmem, size = 0x400, scoped, tag = 'output window, operand 0, single buffered']
    #allocation4 [shape = 's32[1]{0}', space=sflag, size = 0x4, scoped, tag = 'scoped memory for tpu_custom_call.1']
    %13 = vsyncpa [#allocation4], 0
    // Predicated region
    $region2: #{tpu_custom_call.1} parent=1 // pred_check
      _
    $region3: #{tpu_custom_call.1} parent=1 // pred_check_branch
      %15 = sbr.rel (0) target = $region5
    $region4: #{tpu_custom_call.1} parent=1 // pred_region
      _
    $region5: #{tpu_custom_call.1} parent=1 // pred_fallthru
      _
    // Predicated region
    $region6: #{tpu_custom_call.1} parent=1 // pred_check
      _
    $region7: #{tpu_custom_call.1} parent=1 // pred_check_branch
      %17 = sbr.rel (0) target = $region9
    $region8: #{tpu_custom_call.1} parent=1 // pred_region
      _
    $region9: #{tpu_custom_call.1} parent=1 // pred_fallthru
      _
    // Predicated region
    $region10: #{tpu_custom_call.1} parent=1 // pred_check
      _
    $region11: #{tpu_custom_call.1} parent=1 // pred_check_branch
      %19 = sbr.rel (0) target = $region13
    $region12: #{tpu_custom_call.1} parent=1 // pred_region
      _
    $region13: #{tpu_custom_call.1} parent=1 // pred_fallthru
      _
    // Predicated region
    $region14: #{tpu_custom_call.1} parent=1 // pred_check
      _
    $region15: #{tpu_custom_call.1} parent=1 // pred_check_branch
      %21 = sbr.rel (0) target = $region17
    $region16: #{tpu_custom_call.1} parent=1 // pred_region
      _
    $region17: #{tpu_custom_call.1} parent=1 // pred_fallthru
      _
    // Predicated region
    $region18: #{tpu_custom_call.1} parent=1 // pred_check
      _
    $region19: #{tpu_custom_call.1} parent=1 // pred_check_branch
      %23 = sbr.rel (0) target = $region21
    $region20: #{tpu_custom_call.1} parent=1 // pred_region
      _
    $region21: #{tpu_custom_call.1} parent=1 // pred_fallthru
      _
    // Predicated region
    $region22: #{tpu_custom_call.1} parent=1 // pred_check
      _
    $region23: #{tpu_custom_call.1} parent=1 // pred_check_branch
      %25 = sbr.rel (0) target = $region25
    $region24: #{tpu_custom_call.1} parent=1 // pred_region
      _
    $region25: #{tpu_custom_call.1} parent=1 // pred_fallthru
      _
    // Predicated region
    $region26: #{tpu_custom_call.1} parent=1 // pred_check
      _
    $region27: #{tpu_custom_call.1} parent=1 // pred_check_branch
      %27 = sbr.rel (0) target = $region29
    $region28: #{tpu_custom_call.1} parent=1 // pred_region
      _
    $region29: #{tpu_custom_call.1} parent=1 // pred_fallthru
      _
    %v28 = vld [vmem:[%s0] sm:$0xff]
    %v29 = vld [vmem:[%s0 + $0x8] sm:$0xff]
    %v30 = vld [vmem:[%s0 + $0x10] sm:$0xff]
    %v31 = vld [vmem:[%s0 + $0x18] sm:$0xff]
    %v32 = vld [vmem:[%s0 + $0x20] sm:$0xff]
    %v33 = vld [vmem:[%s0 + $0x28] sm:$0xff]
    %v34 = vld [vmem:[%s0 + $0x30] sm:$0xff]
    %v35 = vld [vmem:[%s0 + $0x38] sm:$0xff]
    %v36 = vld [vmem:[%s0 + $0x40] sm:$0xff]
    %v37 = vld [vmem:[%s0 + $0x48] sm:$0xff]
    %v38 = vld [vmem:[%s0 + $0x50] sm:$0xff]
    %v39 = vld [vmem:[%s0 + $0x58] sm:$0xff]
    %v40 = vld [vmem:[%s0 + $0x60] sm:$0xff]
    %v41 = vld [vmem:[%s0 + $0x68] sm:$0xff]
    %v42 = vld [vmem:[%s0 + $0x70] sm:$0xff]
    %v43 = vld [vmem:[%s0 + $0x78] sm:$0xff]
    %v44 = vld [vmem:[%s1] sm:$0xff]
    %v45 = vld [vmem:[%s1 + $0x8] sm:$0xff]
    %v46 = vld [vmem:[%s2] sm:$0x1]
    %v48 = vlaneseq
    %v49 = vshrl.u32 %v48, 7
    %v50 = vsub.s32 0, %v49
    %v51 = vrot.slane %v46, %v50
    %vm53 = vcmask 130048
    %v55 = vsel %vm53, %v28, 0
    %v58 = vsel %vm53, %v29, 0
    %v61 = vsel %vm53, %v30, 0
    %v64 = vsel %vm53, %v31, 0
    %v67 = vsel %vm53, %v32, 0
    %v70 = vsel %vm53, %v33, 0
    %v73 = vsel %vm53, %v34, 0
    %v76 = vsel %vm53, %v35, 0
    %v79 = vsel %vm53, %v36, 0
    %v82 = vsel %vm53, %v37, 0
    %v85 = vsel %vm53, %v38, 0
    %v88 = vsel %vm53, %v39, 0
    %v91 = vsel %vm53, %v40, 0
    %v94 = vsel %vm53, %v41, 0
    %v97 = vsel %vm53, %v42, 0
    %v100 = vsel %vm53, %v43, 0
    %102 = vmatprep.subr.mxu0 0.0
    %103 = vmatpush1.msra.mxu0 %v44
    %104 = vmatprep.subr.mxu0 0.0
    %105 = vmatpush1.msra.mxu0 %v45
    %106 = vmatprep.subr.mxu0 0.0
    %107 = vmatpush1.msra.mxu0 0.0
    %108 = vmatprep.subr.mxu0 0.0
    %109 = vmatpush1.msra.mxu0 0.0
    %110 = vmatprep.subr.mxu0 0.0
    %111 = vmatpush1.msra.mxu0 0.0
    %112 = vmatprep.subr.mxu0 0.0
    %113 = vmatpush1.msra.mxu0 0.0
    %114 = vmatprep.subr.mxu0 0.0
    %115 = vmatpush1.msra.mxu0 0.0
    %116 = vmatprep.subr.mxu0 0.0
    %117 = vmatpush1.msra.mxu0 0.0
    %118 = vmatprep.subr.mxu0 0.0
    %119 = vmatpush1.msra.mxu0 0.0
    %120 = vmatprep.subr.mxu0 0.0
    %121 = vmatpush1.msra.mxu0 0.0
    %122 = vmatprep.subr.mxu0 0.0
    %123 = vmatpush1.msra.mxu0 0.0
    %124 = vmatprep.subr.mxu0 0.0
    %125 = vmatpush1.msra.mxu0 0.0
    %126 = vmatprep.subr.mxu0 0.0
    %127 = vmatpush1.msra.mxu0 0.0
    %128 = vmatprep.subr.mxu0 0.0
    %129 = vmatpush1.msra.mxu0 0.0
    %130 = vmatprep.subr.mxu0 0.0
    %131 = vmatpush1.msra.mxu0 0.0
    %132 = vmatprep.subr.mxu0 0.0
    %133 = vmatpush1.msra.mxu0 0.0
    %134 = vmatprep.subr.mxu0 0.0
    %135 = vmatpush1.msra.mxu0 0.0
    %136 = vmatprep.subr.mxu0 0.0
    %137 = vmatpush1.msra.mxu0 0.0
    %138 = vmatprep.subr.mxu0 0.0
    %139 = vmatpush1.msra.mxu0 0.0
    %140 = vmatprep.subr.mxu0 0.0
    %141 = vmatpush1.msra.mxu0 0.0
    %142 = vmatprep.subr.mxu0 0.0
    %143 = vmatpush1.msra.mxu0 0.0
    %144 = vmatprep.subr.mxu0 0.0
    %145 = vmatpush1.msra.mxu0 0.0
    %146 = vmatprep.subr.mxu0 0.0
    %147 = vmatpush1.msra.mxu0 0.0
    %148 = vmatprep.subr.mxu0 0.0
    %149 = vmatpush1.msra.mxu0 0.0
    %150 = vmatprep.subr.mxu0 0.0
    %151 = vmatpush1.msra.mxu0 0.0
    %152 = vmatprep.subr.mxu0 0.0
    %153 = vmatpush1.msra.mxu0 0.0
    %154 = vmatprep.subr.mxu0 0.0
    %155 = vmatpush1.msra.mxu0 0.0
    %156 = vmatprep.subr.mxu0 0.0
    %157 = vmatpush1.msra.mxu0 0.0
    %158 = vmatprep.subr.mxu0 0.0
    %159 = vmatpush1.msra.mxu0 0.0
    %160 = vmatprep.subr.mxu0 0.0
    %161 = vmatpush1.msra.mxu0 0.0
    %162 = vmatprep.subr.mxu0 0.0
    %163 = vmatpush1.msra.mxu0 0.0
    %164 = vmatprep.subr.mxu0 0.0
    %165 = vmatpush1.msra.mxu0 0.0
    %166 = vmatprep.mubr.f32.mxu0 0.0
    %167 = vmatmul.mubr.f32.gmra.mrb[0].mxu0 %v55
    %v168 = vpop.f32.mrb[0].mxu0
    %v169 = vadd.f32 %v51, %v168
    %v170 = vpop.f32.mrb[0].mxu0
    %171 = vmatprep.mubr.f32.mxu0 0.0
    %172 = vmatmul.mubr.f32.gmra.mrb[0].mxu0 %v58
    %v173 = vpop.f32.mrb[0].mxu0
    %v174 = vadd.f32 %v51, %v173
    %v175 = vpop.f32.mrb[0].mxu0
    %176 = vmatprep.mubr.f32.mxu0 0.0
    %177 = vmatmul.mubr.f32.gmra.mrb[0].mxu0 %v61
    %v178 = vpop.f32.mrb[0].mxu0
    %v179 = vadd.f32 %v51, %v178
    %v180 = vpop.f32.mrb[0].mxu0
    %181 = vmatprep.mubr.f32.mxu0 0.0
    %182 = vmatmul.mubr.f32.gmra.mrb[0].mxu0 %v64
    %v183 = vpop.f32.mrb[0].mxu0
    %v184 = vadd.f32 %v51, %v183
    %v185 = vpop.f32.mrb[0].mxu0
    %186 = vmatprep.mubr.f32.mxu0 0.0
    %187 = vmatmul.mubr.f32.gmra.mrb[0].mxu0 %v67
    %v188 = vpop.f32.mrb[0].mxu0
    %v189 = vadd.f32 %v51, %v188
    %v190 = vpop.f32.mrb[0].mxu0
    %191 = vmatprep.mubr.f32.mxu0 0.0
    %192 = vmatmul.mubr.f32.gmra.mrb[0].mxu0 %v70
    %v193 = vpop.f32.mrb[0].mxu0
    %v194 = vadd.f32 %v51, %v193
    %v195 = vpop.f32.mrb[0].mxu0
    %196 = vmatprep.mubr.f32.mxu0 0.0
    %197 = vmatmul.mubr.f32.gmra.mrb[0].mxu0 %v73
    %v198 = vpop.f32.mrb[0].mxu0
    %v199 = vadd.f32 %v51, %v198
    %v200 = vpop.f32.mrb[0].mxu0
    %201 = vmatprep.mubr.f32.mxu0 0.0
    %202 = vmatmul.mubr.f32.gmra.mrb[0].mxu0 %v76
    %v203 = vpop.f32.mrb[0].mxu0
    %v204 = vadd.f32 %v51, %v203
    %v205 = vpop.f32.mrb[0].mxu0
    %206 = vmatprep.mubr.f32.mxu0 0.0
    %207 = vmatmul.mubr.f32.gmra.mrb[0].mxu0 %v79
    %v208 = vpop.f32.mrb[0].mxu0
    %v209 = vadd.f32 %v51, %v208
    %v210 = vpop.f32.mrb[0].mxu0
    %211 = vmatprep.mubr.f32.mxu0 0.0
    %212 = vmatmul.mubr.f32.gmra.mrb[0].mxu0 %v82
    %v213 = vpop.f32.mrb[0].mxu0
    %v214 = vadd.f32 %v51, %v213
    %v215 = vpop.f32.mrb[0].mxu0
    %216 = vmatprep.mubr.f32.mxu0 0.0
    %217 = vmatmul.mubr.f32.gmra.mrb[0].mxu0 %v85
    %v218 = vpop.f32.mrb[0].mxu0
    %v219 = vadd.f32 %v51, %v218
    %v220 = vpop.f32.mrb[0].mxu0
    %221 = vmatprep.mubr.f32.mxu0 0.0
    %222 = vmatmul.mubr.f32.gmra.mrb[0].mxu0 %v88
    %v223 = vpop.f32.mrb[0].mxu0
    %v224 = vadd.f32 %v51, %v223
    %v225 = vpop.f32.mrb[0].mxu0
    %226 = vmatprep.mubr.f32.mxu0 0.0
    %227 = vmatmul.mubr.f32.gmra.mrb[0].mxu0 %v91
    %v228 = vpop.f32.mrb[0].mxu0
    %v229 = vadd.f32 %v51, %v228
    %v230 = vpop.f32.mrb[0].mxu0
    %231 = vmatprep.mubr.f32.mxu0 0.0
    %232 = vmatmul.mubr.f32.gmra.mrb[0].mxu0 %v94
    %v233 = vpop.f32.mrb[0].mxu0
    %v234 = vadd.f32 %v51, %v233
    %v235 = vpop.f32.mrb[0].mxu0
    %236 = vmatprep.mubr.f32.mxu0 0.0
    %237 = vmatmul.mubr.f32.gmra.mrb[0].mxu0 %v97
    %v238 = vpop.f32.mrb[0].mxu0
    %v239 = vadd.f32 %v51, %v238
    %v240 = vpop.f32.mrb[0].mxu0
    %241 = vmatprep.mubr.f32.mxu0 0.0
    %242 = vmatmul.mubr.f32.gmra.mrb[0].mxu0 %v100
    %v243 = vpop.f32.mrb[0].mxu0
    %v244 = vadd.f32 %v51, %v243
    %v245 = vpop.f32.mrb[0].mxu0
    %246 = vdwg.mxu0
    %v247 = vmax.f32 %v169, 0.0
    %v248 = vmax.f32 %v174, 0.0
    %v249 = vmax.f32 %v179, 0.0
    %v250 = vmax.f32 %v184, 0.0
    %v251 = vmax.f32 %v189, 0.0
    %v252 = vmax.f32 %v194, 0.0
    %v253 = vmax.f32 %v199, 0.0
    %v254 = vmax.f32 %v204, 0.0
    %v255 = vmax.f32 %v209, 0.0
    %v256 = vmax.f32 %v214, 0.0
    %v257 = vmax.f32 %v219, 0.0
    %v258 = vmax.f32 %v224, 0.0
    %v259 = vmax.f32 %v229, 0.0
    %v260 = vmax.f32 %v234, 0.0
    %v261 = vmax.f32 %v239, 0.0
    %v262 = vmax.f32 %v244, 0.0
    %v263 = vld [vmem:[%s3] sm:$0xff]
    %v264 = vld [vmem:[%s3 + $0x8] sm:$0xff]
    %v265 = vld [vmem:[%s3 + $0x10] sm:$0xff]
    %v266 = vld [vmem:[%s3 + $0x18] sm:$0xff]
    %v267 = vld [vmem:[%s3 + $0x20] sm:$0xff]
    %v268 = vld [vmem:[%s3 + $0x28] sm:$0xff]
    %v269 = vld [vmem:[%s3 + $0x30] sm:$0xff]
    %v270 = vld [vmem:[%s3 + $0x38] sm:$0xff]
    %v271 = vld [vmem:[%s3 + $0x40] sm:$0xff]
    %v272 = vld [vmem:[%s3 + $0x48] sm:$0xff]
    %v273 = vld [vmem:[%s3 + $0x50] sm:$0xff]
    %v274 = vld [vmem:[%s3 + $0x58] sm:$0xff]
    %v275 = vld [vmem:[%s3 + $0x60] sm:$0xff]
    %v276 = vld [vmem:[%s3 + $0x68] sm:$0xff]
    %v277 = vld [vmem:[%s3 + $0x70] sm:$0xff]
    %v278 = vld [vmem:[%s3 + $0x78] sm:$0xff]
    %v279 = vld [vmem:[%s4] sm:$0x1]
    %v281 = vlaneseq
    %v282 = vshrl.u32 %v281, 7
    %v283 = vsub.s32 0, %v282
    %v284 = vrot.slane %v279, %v283
    %286 = vmatprep.subr.mxu0 0.0
    %287 = vmatpush1.msra.mxu0 %v263
    %288 = vmatprep.subr.mxu0 0.0
    %289 = vmatpush1.msra.mxu0 %v264
    %290 = vmatprep.subr.mxu0 0.0
    %291 = vmatpush1.msra.mxu0 %v265
    %292 = vmatprep.subr.mxu0 0.0
    %293 = vmatpush1.msra.mxu0 %v266
    %294 = vmatprep.subr.mxu0 0.0
    %295 = vmatpush1.msra.mxu0 %v267
    %296 = vmatprep.subr.mxu0 0.0
    %297 = vmatpush1.msra.mxu0 %v268
    %298 = vmatprep.subr.mxu0 0.0
    %299 = vmatpush1.msra.mxu0 %v269
    %300 = vmatprep.subr.mxu0 0.0
    %301 = vmatpush1.msra.mxu0 %v270
    %302 = vmatprep.subr.mxu0 0.0
    %303 = vmatpush1.msra.mxu0 %v271
    %304 = vmatprep.subr.mxu0 0.0
    %305 = vmatpush1.msra.mxu0 %v272
    %306 = vmatprep.subr.mxu0 0.0
    %307 = vmatpush1.msra.mxu0 %v273
    %308 = vmatprep.subr.mxu0 0.0
    %309 = vmatpush1.msra.mxu0 %v274
    %310 = vmatprep.subr.mxu0 0.0
    %311 = vmatpush1.msra.mxu0 %v275
    %312 = vmatprep.subr.mxu0 0.0
    %313 = vmatpush1.msra.mxu0 %v276
    %314 = vmatprep.subr.mxu0 0.0
    %315 = vmatpush1.msra.mxu0 %v277
    %316 = vmatprep.subr.mxu0 0.0
    %317 = vmatpush1.msra.mxu0 %v278
    %318 = vmatprep.subr.mxu0 0.0
    %319 = vmatpush1.msra.mxu0 0.0
    %320 = vmatprep.subr.mxu0 0.0
    %321 = vmatpush1.msra.mxu0 0.0
    %322 = vmatprep.subr.mxu0 0.0
    %323 = vmatpush1.msra.mxu0 0.0
    %324 = vmatprep.subr.mxu0 0.0
    %325 = vmatpush1.msra.mxu0 0.0
    %326 = vmatprep.subr.mxu0 0.0
    %327 = vmatpush1.msra.mxu0 0.0
    %328 = vmatprep.subr.mxu0 0.0
    %329 = vmatpush1.msra.mxu0 0.0
    %330 = vmatprep.subr.mxu0 0.0
    %331 = vmatpush1.msra.mxu0 0.0
    %332 = vmatprep.subr.mxu0 0.0
    %333 = vmatpush1.msra.mxu0 0.0
    %334 = vmatprep.subr.mxu0 0.0
    %335 = vmatpush1.msra.mxu0 0.0
    %336 = vmatprep.subr.mxu0 0.0
    %337 = vmatpush1.msra.mxu0 0.0
    %338 = vmatprep.subr.mxu0 0.0
    %339 = vmatpush1.msra.mxu0 0.0
    %340 = vmatprep.subr.mxu0 0.0
    %341 = vmatpush1.msra.mxu0 0.0
    %342 = vmatprep.subr.mxu0 0.0
    %343 = vmatpush1.msra.mxu0 0.0
    %344 = vmatprep.subr.mxu0 0.0
    %345 = vmatpush1.msra.mxu0 0.0
    %346 = vmatprep.subr.mxu0 0.0
    %347 = vmatpush1.msra.mxu0 0.0
    %348 = vmatprep.subr.mxu0 0.0
    %349 = vmatpush1.msra.mxu0 0.0
    %350 = vmatprep.mubr.f32.mxu0 0.0
    %351 = vmatmul.mubr.f32.gmra.mrb[0].mxu0 %v247
    %v352 = vpop.f32.mrb[0].mxu0
    %v353 = vadd.f32 %v284, %v352
    %v354 = vpop.f32.mrb[0].mxu0
    %355 = vmatprep.mubr.f32.mxu0 0.0
    %356 = vmatmul.mubr.f32.gmra.mrb[0].mxu0 %v248
    %v357 = vpop.f32.mrb[0].mxu0
    %v358 = vadd.f32 %v284, %v357
    %v359 = vpop.f32.mrb[0].mxu0
    %360 = vmatprep.mubr.f32.mxu0 0.0
    %361 = vmatmul.mubr.f32.gmra.mrb[0].mxu0 %v249
    %v362 = vpop.f32.mrb[0].mxu0
    %v363 = vadd.f32 %v284, %v362
    %v364 = vpop.f32.mrb[0].mxu0
    %365 = vmatprep.mubr.f32.mxu0 0.0
    %366 = vmatmul.mubr.f32.gmra.mrb[0].mxu0 %v250
    %v367 = vpop.f32.mrb[0].mxu0
    %v368 = vadd.f32 %v284, %v367
    %v369 = vpop.f32.mrb[0].mxu0
    %370 = vmatprep.mubr.f32.mxu0 0.0
    %371 = vmatmul.mubr.f32.gmra.mrb[0].mxu0 %v251
    %v372 = vpop.f32.mrb[0].mxu0
    %v373 = vadd.f32 %v284, %v372
    %v374 = vpop.f32.mrb[0].mxu0
    %375 = vmatprep.mubr.f32.mxu0 0.0
    %376 = vmatmul.mubr.f32.gmra.mrb[0].mxu0 %v252
    %v377 = vpop.f32.mrb[0].mxu0
    %v378 = vadd.f32 %v284, %v377
    %v379 = vpop.f32.mrb[0].mxu0
    %380 = vmatprep.mubr.f32.mxu0 0.0
    %381 = vmatmul.mubr.f32.gmra.mrb[0].mxu0 %v253
    %v382 = vpop.f32.mrb[0].mxu0
    %v383 = vadd.f32 %v284, %v382
    %v384 = vpop.f32.mrb[0].mxu0
    %385 = vmatprep.mubr.f32.mxu0 0.0
    %386 = vmatmul.mubr.f32.gmra.mrb[0].mxu0 %v254
    %v387 = vpop.f32.mrb[0].mxu0
    %v388 = vadd.f32 %v284, %v387
    %v389 = vpop.f32.mrb[0].mxu0
    %390 = vmatprep.mubr.f32.mxu0 0.0
    %391 = vmatmul.mubr.f32.gmra.mrb[0].mxu0 %v255
    %v392 = vpop.f32.mrb[0].mxu0
    %v393 = vadd.f32 %v284, %v392
    %v394 = vpop.f32.mrb[0].mxu0
    %395 = vmatprep.mubr.f32.mxu0 0.0
    %396 = vmatmul.mubr.f32.gmra.mrb[0].mxu0 %v256
    %v397 = vpop.f32.mrb[0].mxu0
    %v398 = vadd.f32 %v284, %v397
    %v399 = vpop.f32.mrb[0].mxu0
    %400 = vmatprep.mubr.f32.mxu0 0.0
    %401 = vmatmul.mubr.f32.gmra.mrb[0].mxu0 %v257
    %v402 = vpop.f32.mrb[0].mxu0
    %v403 = vadd.f32 %v284, %v402
    %v404 = vpop.f32.mrb[0].mxu0
    %405 = vmatprep.mubr.f32.mxu0 0.0
    %406 = vmatmul.mubr.f32.gmra.mrb[0].mxu0 %v258
    %v407 = vpop.f32.mrb[0].mxu0
    %v408 = vadd.f32 %v284, %v407
    %v409 = vpop.f32.mrb[0].mxu0
    %410 = vmatprep.mubr.f32.mxu0 0.0
    %411 = vmatmul.mubr.f32.gmra.mrb[0].mxu0 %v259
    %v412 = vpop.f32.mrb[0].mxu0
    %v413 = vadd.f32 %v284, %v412
    %v414 = vpop.f32.mrb[0].mxu0
    %415 = vmatprep.mubr.f32.mxu0 0.0
    %416 = vmatmul.mubr.f32.gmra.mrb[0].mxu0 %v260
    %v417 = vpop.f32.mrb[0].mxu0
    %v418 = vadd.f32 %v284, %v417
    %v419 = vpop.f32.mrb[0].mxu0
    %420 = vmatprep.mubr.f32.mxu0 0.0
    %421 = vmatmul.mubr.f32.gmra.mrb[0].mxu0 %v261
    %v422 = vpop.f32.mrb[0].mxu0
    %v423 = vadd.f32 %v284, %v422
    %v424 = vpop.f32.mrb[0].mxu0
    %425 = vmatprep.mubr.f32.mxu0 0.0
    %426 = vmatmul.mubr.f32.gmra.mrb[0].mxu0 %v262
    %v427 = vpop.f32.mrb[0].mxu0
    %v428 = vadd.f32 %v284, %v427
    %v429 = vpop.f32.mrb[0].mxu0
    %430 = vdwg.mxu0
    %v431 = vmax.f32 %v353, 0.0
    %v432 = vmax.f32 %v358, 0.0
    %v433 = vmax.f32 %v363, 0.0
    %v434 = vmax.f32 %v368, 0.0
    %v435 = vmax.f32 %v373, 0.0
    %v436 = vmax.f32 %v378, 0.0
    %v437 = vmax.f32 %v383, 0.0
    %v438 = vmax.f32 %v388, 0.0
    %v439 = vmax.f32 %v393, 0.0
    %v440 = vmax.f32 %v398, 0.0
    %v441 = vmax.f32 %v403, 0.0
    %v442 = vmax.f32 %v408, 0.0
    %v443 = vmax.f32 %v413, 0.0
    %v444 = vmax.f32 %v418, 0.0
    %v445 = vmax.f32 %v423, 0.0
    %v446 = vmax.f32 %v428, 0.0
    %447 = vxpose.xlu0.b32.start [1/16] %v431, 128
    %448 = vxpose.xlu0.b32.cont [2/16] %v432, 128
    %449 = vxpose.xlu0.b32.cont [3/16] %v433, 128
    %450 = vxpose.xlu0.b32.cont [4/16] %v434, 128
    %451 = vxpose.xlu0.b32.cont [5/16] %v435, 128
    %452 = vxpose.xlu0.b32.cont [6/16] %v436, 128
    %453 = vxpose.xlu0.b32.cont [7/16] %v437, 128
    %454 = vxpose.xlu0.b32.cont [8/16] %v438, 128
    %455 = vxpose.xlu0.b32.cont [9/16] %v439, 128
    %456 = vxpose.xlu0.b32.cont [10/16] %v440, 128
    %457 = vxpose.xlu0.b32.cont [11/16] %v441, 128
    %458 = vxpose.xlu0.b32.cont [12/16] %v442, 128
    %459 = vxpose.xlu0.b32.cont [13/16] %v443, 128
    %460 = vxpose.xlu0.b32.cont [14/16] %v444, 128
    %461 = vxpose.xlu0.b32.cont [15/16] %v445, 128
    %462 = vxpose.xlu0.b32.end [16/16] %v446, 128
    %v463 = vpop.trf.xlu0
    %v464 = vpop.trf.xlu0
    %v465 = vpop.trf.xlu0
    %v466 = vpop.trf.xlu0
    %v467 = vpop.trf.xlu0
    %v468 = vpop.trf.xlu0
    %v469 = vpop.trf.xlu0
    %v470 = vpop.trf.xlu0
    %v471 = vpop.trf.xlu0
    %v472 = vpop.trf.xlu0
    %v473 = vpop.trf.xlu0
    %v474 = vpop.trf.xlu0
    %v475 = vpop.trf.xlu0
    %v476 = vpop.trf.xlu0
    %v477 = vpop.trf.xlu0
    %v478 = vpop.trf.xlu0
    %v479 = vld [vmem:[%s5] sm:$0xff]
    %v480 = vld [vmem:[%s5 + $0x8] sm:$0xff]
    %v481 = vld [vmem:[%s5 + $0x10] sm:$0xff]
    %v482 = vld [vmem:[%s5 + $0x18] sm:$0xff]
    %484 = vset.pattern.permute.xlu0 0
    %485 = vperm.xlu0 %484, %v479
    %v486 = vpop.permute.xlu0 %485
    %489 = vset.pattern.permute.xlu0 0
    %490 = vperm.xlu0 %489, %v480
    %v491 = vpop.permute.xlu0 %490
    %494 = vset.pattern.permute.xlu0 0
    %495 = vperm.xlu0 %494, %v481
    %v496 = vpop.permute.xlu0 %495
    %499 = vset.pattern.permute.xlu0 0
    %500 = vperm.xlu0 %499, %v482
    %v501 = vpop.permute.xlu0 %500
    %v503 = vmul.f32 %v463, %v486
    %v504 = vmul.f32 %v464, %v491
    %v505 = vmul.f32 %v465, %v496
    %v506 = vmul.f32 %v466, %v501
    %v507 = vadd.f32 %v503, %v504
    %v508 = vadd.f32 %v507, %v505
    %v509 = vadd.f32 %v508, %v506
    %v510 = vrot.slane %v509, 4
    %v511 = vadd.f32 %v509, %v510
    %v512 = vrot.slane %v511, 2
    %v513 = vadd.f32 %v511, %v512
    %v514 = vrot.slane %v513, 1
    %v515 = vadd.f32 %v513, %v514
    %s516 = sld [smem:[#allocation2]]
    %v517 = vstv %s516
    %v518 = vadd.f32 %v515, %v517
    %v519 = vmin.f32 %v518, 20.0
    %v520 = vmul.f32 %v519, 1.442695
    %v521 = vpow.pop %v520
    %v522 = vadd.f32 %v521, 1.0
    %v523 = vlog2.pop %v522
    %v524 = vmul.f32 %v523, 0.6931472
    %v525 = vmul.f32 -0.5, %v521
    %v526 = vadd.f32 %v525, 1.0
    %v527 = vmul.f32 %v526, %v521
    %v528 = vand.u32 2147483647, %v521
    %vm529 = vcmp.lt.f32.partialorder %v528, 0.0004427343
    %v530 = vsel %vm529, %v527, %v524
    %vm531 = vcmp.gt.f32.partialorder %v518, 20.0
    %v532 = vsel %vm531, %v518, %v530
    %533 = vst [vmem:[#allocation3] sm:$0x1] %v532
    // Predicated region
    $region30: #{tpu_custom_call.1} parent=1 // pred_check
      _
    $region31: #{tpu_custom_call.1} parent=1 // pred_check_branch
      %535 = sbr.rel (0) target = $region33
    $region32: #{tpu_custom_call.1} parent=1 // pred_region
      %s537 = ssub.s32 16, 16
      %538 = vsyncadd [#allocation4], %s537
      %s540 = sshll.u32 [#allocation3], 4
      %s541 = int_to_ptr.vmem [resolvable:$true] %s540
      %543 = dma.vmem_to_hbm [thread:$0]  %s541, 16, %s7, [#allocation4]
    $region33: #{tpu_custom_call.1} parent=1 // pred_fallthru
      _
    // Predicated region
    $region34: #{tpu_custom_call.1} parent=1 // pred_check
      _
    $region35: #{tpu_custom_call.1} parent=1 // pred_check_branch
      %545 = sbr.rel (0) target = $region37
    $region36: #{tpu_custom_call.1} parent=1 // pred_region
      %546 = dma.done [#allocation4], 16
    $region37: #{tpu_custom_call.1} parent=1 // pred_fallthru
      _
    %547 = vsyncpa [#allocation4], 1

</llo_original>
